<compile_context>
chip_gen: v5e
topology: v5e:2x2
jax: 0.10.0
libtpu: 0.0.40
codegen_flags: <defaults>
</compile_context>

<pallas_src>
import math

import numpy as np
import jax
import jax.numpy as jnp
from jax.experimental import pallas as pl
from jax.experimental.pallas import tpu as pltpu

_LANE = 128


def _get_sinusoid_encoding_table(n_position: int, d_hid: int) -> jnp.ndarray:
    """Exact replica of the PyTorch buffer (float32, shape (n_position, d_hid))."""
    pos = np.arange(n_position, dtype=np.float64)[:, None]            # (P, 1)
    i = np.arange(d_hid, dtype=np.float64)[None, :]                    # (1, D)
    angle = pos / np.power(10000.0, 2.0 * np.floor(i / 2.0) / d_hid)   # (P, D)
    table = np.empty_like(angle)
    table[:, 0::2] = np.sin(angle[:, 0::2])
    table[:, 1::2] = np.cos(angle[:, 1::2])
    return jnp.asarray(table, dtype=jnp.float32)


def _add_pos_kernel(x_ref, pos_ref, o_ref):
    # Pure VPU elementwise add; cast x to the promoted output dtype in-kernel
    # so no extra HBM pass is needed for low-precision inputs.
    o_ref[...] = x_ref[...].astype(o_ref.dtype) + pos_ref[...]


def _block_config():
    """Per-generation block-byte target and scoped-VMEM limit."""
    target = 4 * 1024 * 1024          # v5e / v6e (and unknown chips)
    vmem_limit = 32 * 1024 * 1024
    try:
        info = pltpu.get_tpu_info()
        cap = getattr(info, "vmem_capacity_bytes", None)
        if cap is not None and cap <= 96 * 1024 * 1024:   # v7x-class: 64 MiB VMEM, 3.2 TB/s HBM
            target = 6 * 1024 * 1024
            vmem_limit = 48 * 1024 * 1024
    except Exception:
        pass
    return target, vmem_limit


def _compiler_params(vmem_limit):
    return pltpu.CompilerParams(
        dimension_semantics=("parallel",),
        vmem_limit_bytes=vmem_limit,
    )


def _cost(B, S, D, x_dtype, out_dtype):
    xb = B * S * D * jnp.dtype(x_dtype).itemsize
    ob = B * S * D * jnp.dtype(out_dtype).itemsize
    pb = S * D * jnp.dtype(out_dtype).itemsize
    return pl.CostEstimate(flops=B * S * D, transcendentals=0,
                           bytes_accessed=xb + ob + pb)


def _row_tile_divisor(P, target_rows):
    """A multiple-of-8 divisor of P near target_rows (P % 8 == 0). O(1), no scan."""
    q = P // 8
    cap = max(1, target_rows // 8)
    cand = min(q, cap)
    if q % cand == 0:
        return 8 * cand
    return 8 * math.gcd(q, cand)


def _flat_forward(x, pos, out_dtype, target_bytes, vmem_limit):
    """Lane-dense path: x -> (N, 128), pos -> (P, 128); row-tiled 1-D grid."""
    B, S, D = x.shape
    N = (B * S * D) // _LANE
    P = (S * D) // _LANE
    io_item = max(jnp.dtype(x.dtype).itemsize, jnp.dtype(out_dtype).itemsize)
    target_rows = max(8, target_bytes // (_LANE * io_item))

    x2 = x.reshape(N, _LANE)
    posf = pos.reshape(P, _LANE)

    if N <= target_rows:
        # Whole problem fits in one block (tiny inputs like the demo).
        tr = N
        reps = N // P
        pos_in = jnp.tile(posf, (reps, 1)) if reps > 1 else posf
        pos_index = lambda r: (0, 0)
    else:
        # Smallest multiple of P that is also a multiple of 8 (sublane-aligned).
        base = P * (8 // math.gcd(P, 8))
        if base <= target_rows:
            # pos (tiled to tr rows) fits in a block: constant index -> resident
            # in VMEM across all row steps (read once from HBM).
            tr = base * max(1, target_rows // base)
            pos_in = jnp.tile(posf, (tr // P, 1))
            pos_index = lambda r: (0, 0)
        elif P % 8 == 0:
            # pos table bigger than a block: modulo block indexing on posf.
            tr = _row_tile_divisor(P, target_rows)
            pos_in = posf
            n_pos_blocks = P // tr
            pos_index = lambda r: (r % n_pos_blocks, 0)
        else:
            return None  # awkward shape: let the caller take the batched path

    grid = (pl.cdiv(N, tr),)
    aliases = {0: 0} if x.dtype == jnp.dtype(out_dtype) else {}

    out2 = pl.pallas_call(
        _add_pos_kernel,
        out_shape=jax.ShapeDtypeStruct((N, _LANE), out_dtype),
        grid_spec=pltpu.PrefetchScalarGridSpec(
            num_scalar_prefetch=0,
            grid=grid,
            in_specs=[
                pl.BlockSpec((tr, _LANE), lambda r: (r, 0)),
                pl.BlockSpec((tr, _LANE), pos_index),
            ],
            out_specs=pl.BlockSpec((tr, _LANE), lambda r: (r, 0)),
        ),
        compiler_params=_compiler_params(vmem_limit),
        input_output_aliases=aliases,
        cost_estimate=_cost(B, S, D, x.dtype, out_dtype),
    )(x2, pos_in)
    return out2.reshape(B, S, D)


def _batched_forward(x, pos, out_dtype, target_bytes, vmem_limit):
    """Fallback path (S*D not a multiple of 128): fuse Bt batches per step."""
    B, S, D = x.shape
    io_item = max(jnp.dtype(x.dtype).itemsize, jnp.dtype(out_dtype).itemsize)
    per_batch = max(1, S * D * io_item)
    Bt = int(min(B, max(1, target_bytes // per_batch)))
    grid = (pl.cdiv(B, Bt),)
    aliases = {0: 0} if x.dtype == jnp.dtype(out_dtype) else {}
    # TODO(synk): when D < 128 the output stores are masked (vst.msk); padding D up to
    # a multiple of 128 would make them lane-dense at the cost of an extra XLA pad pass.
    return pl.pallas_call(
        _add_pos_kernel,
        out_shape=jax.ShapeDtypeStruct((B, S, D), out_dtype),
        grid_spec=pltpu.PrefetchScalarGridSpec(
            num_scalar_prefetch=0,
            grid=grid,
            in_specs=[
                pl.BlockSpec((Bt, S, D), lambda b: (b, 0, 0)),
                pl.BlockSpec((S, D), lambda b: (0, 0)),   # resident across all steps
            ],
            out_specs=pl.BlockSpec((Bt, S, D), lambda b: (b, 0, 0)),
        ),
        compiler_params=_compiler_params(vmem_limit),
        input_output_aliases=aliases,
        cost_estimate=_cost(B, S, D, x.dtype, out_dtype),
    )(x, pos)


@jax.jit
def positional_encoding_forward(x: jnp.ndarray, pos_table: jnp.ndarray) -> jnp.ndarray:
    """x: (B, S, D); pos_table: (n_position, d_hid); returns x + pos_table[:S]."""
    B, S, D = x.shape
    # Match PyTorch type promotion (f32 buffer promotes low-precision x).
    out_dtype = jnp.result_type(x.dtype, pos_table.dtype)
    pos = pos_table[:S, :].astype(out_dtype)
    target_bytes, vmem_limit = _block_config()

    if (S * D) % _LANE == 0:
        out = _flat_forward(x, pos, out_dtype, target_bytes, vmem_limit)
        if out is not None:
            return out
    return _batched_forward(x, pos, out_dtype, target_bytes, vmem_limit)


if __name__ == "__main__":
    # Module hyperparameters.
    d_hid = 32
    n_position = 200

    # Deterministic buffer construction (matches the PyTorch register_buffer).
    pos_table = _get_sinusoid_encoding_table(n_position, d_hid)  # (200, 32)

    # Deterministic example input: batch=2, seq=8, hidden=32.
    key = jax.random.PRNGKey(0)
    B, S, D = 2, 8, d_hid
    x = jax.random.normal(key, (B, S, D), dtype=jnp.float32)

    out = positional_encoding_forward(x, pos_table)
    out = jax.block_until_ready(out)

    # Reference check against plain-JAX semantics of the PyTorch forward.
    ref = x + pos_table[None, :S, :]
    np.testing.assert_allclose(np.asarray(out), np.asarray(ref), rtol=1e-6, atol=1e-6)

    print("KERNEL_OK")
</pallas_src>

<mosaic_0001>
module attributes {stable_mosaic.version = 11 : i64} {
  func.func @_add_pos_kernel(%arg0: i32, %arg1: memref<4x128xf32, #tpu.memory_space<vmem>>, %arg2: memref<4x128xf32, #tpu.memory_space<vmem>>, %arg3: memref<4x128xf32, #tpu.memory_space<vmem>>) attributes {dimension_semantics = [#tpu.dimension_semantics<parallel>], iteration_bounds = array<i64: 1>, scalar_prefetch = 0 : i64, scratch_operands = 0 : i64, tpu.core_type = #tpu.core_type<tc>, window_params = [{transform_indices = @transform_0, window_bounds = array<i64: 4, 128>}, {pipeline_mode = #tpu.pipeline_mode<synchronous>, transform_indices = @transform_1, window_bounds = array<i64: 4, 128>}, {transform_indices = @transform_2, window_bounds = array<i64: 4, 128>}]} {
    %c0 = arith.constant 0 : index
    %c0_0 = arith.constant 0 : index
    %0 = vector.load %arg1[%c0, %c0_0] : memref<4x128xf32, #tpu.memory_space<vmem>>, vector<4x128xf32>
    %c0_1 = arith.constant 0 : index
    %c0_2 = arith.constant 0 : index
    %1 = vector.load %arg2[%c0_1, %c0_2] : memref<4x128xf32, #tpu.memory_space<vmem>>, vector<4x128xf32>
    %2 = arith.addf %0, %1 : vector<4x128xf32>
    %c0_3 = arith.constant 0 : index
    %c0_4 = arith.constant 0 : index
    %3 = vector.load %arg3[%c0_3, %c0_4] : memref<4x128xf32, #tpu.memory_space<vmem>>, vector<4x128xf32>
    tpu.vector_store %arg3[%c0_3, %c0_4], %2 {strides = array<i32>} : memref<4x128xf32, #tpu.memory_space<vmem>>, vector<4x128xf32>,
    return
  }
  func.func @transform_0(%arg0: i32) -> (i32, i32) {
    %c0_i32 = arith.constant 0 : i32
    %c0_i32_0 = arith.constant 0 : i32
    return %arg0, %c0_i32 : i32, i32
  }
  func.func @transform_1(%arg0: i32) -> (i32, i32) {
    %c0_i32 = arith.constant 0 : i32
    %c0_i32_0 = arith.constant 0 : i32
    %c0_i32_1 = arith.constant 0 : i32
    return %c0_i32, %c0_i32_0 : i32, i32
  }
  func.func @transform_2(%arg0: i32) -> (i32, i32) {
    %c0_i32 = arith.constant 0 : i32
    %c0_i32_0 = arith.constant 0 : i32
    return %arg0, %c0_i32 : i32, i32
  }
}

</mosaic_0001>

<llo_original>
// kernel: positional_encoding_forward.1
$region0: #{positional_encoding_forward.1}
  #allocation0 [shape = 'u32[]', space=smem, size = 0x4, offset = 0x4, fixed_abs, tag = 'smem constant byte address 0x4 - core index']
  #allocation1 [shape = 'u32[72,128]{1,0:T(1,128)}', space=vmem, size = 0x9000, scoped, tag = 'internal scratch']
  %s0 = inlined_call_operand.vmem [shape: f32[4,128], index: 0, kind: input, shape index: {}, may-alias: {0,2}]
  %s1 = inlined_call_operand.vmem [shape: f32[4,128], index: 1, kind: input, shape index: {}]
  %s2 = inlined_call_operand.vmem [shape: f32[4,128], index: 2, kind: output, shape index: {}, may-alias: {0,2}]
  %s3 = sld [smem:[#allocation0]]
  $region18: #{positional_encoding_forward.1} parent=0
    _
  %s5 = ssub.s32 1, %s3
  %s6 = scalar_select 0, %s5, %s3
  // Predicated region
  $region2: #{positional_encoding_forward.1} parent=0 // pred_check
    _
  $region3: #{positional_encoding_forward.1} parent=0 // pred_check_branch
    %8 = sbr.rel (0) target = $region5
  $region4: #{positional_encoding_forward.1} parent=0 // pred_region
    _
  $region5: #{positional_encoding_forward.1} parent=0 // pred_fallthru
    _
  // Predicated region
  $region6: #{positional_encoding_forward.1} parent=0 // pred_check
    _
  $region7: #{positional_encoding_forward.1} parent=0 // pred_check_branch
    %10 = sbr.rel (0) target = $region9
  $region8: #{positional_encoding_forward.1} parent=0 // pred_region
    _
  $region9: #{positional_encoding_forward.1} parent=0 // pred_fallthru
    _
  %v11 = vld [vmem:[%s0] sm:$0xf]
  %v12 = vld [vmem:[%s1] sm:$0xf]
  %v13 = vadd.f32 %v11, %v12
  %14 = vst [vmem:[%s2] sm:$0xf] %v13
  // Predicated region
  $region10: #{positional_encoding_forward.1} parent=0 // pred_check
    _
  $region11: #{positional_encoding_forward.1} parent=0 // pred_check_branch
    %16 = sbr.rel (0) target = $region13
  $region12: #{positional_encoding_forward.1} parent=0 // pred_region
    _
  $region13: #{positional_encoding_forward.1} parent=0 // pred_fallthru
    _
  // Predicated region
  $region14: #{positional_encoding_forward.1} parent=0 // pred_check
    _
  $region15: #{positional_encoding_forward.1} parent=0 // pred_check_branch
    %18 = sbr.rel (0) target = $region17
  $region16: #{positional_encoding_forward.1} parent=0 // pred_region
    _
  $region17: #{positional_encoding_forward.1} parent=0 // pred_fallthru
    _

</llo_original>
